<compile_context>
chip_gen: v6e
topology: v6e:2x2x1
jax: 0.10.0
libtpu: 0.0.40
codegen_flags: <defaults>
</compile_context>

<pallas_src>
import functools

import jax
import jax.numpy as jnp
from jax.experimental import pallas as pl
from jax.experimental.pallas import tpu as pltpu

_LANE = 128


def _mlp_kernel(x_ref, w1_ref, b1_ref, w2_ref, b2_ref, o_ref, *, tanh_dtype):
    # x_ref: (tb, 3) batch-major input tile (batch on sublanes).
    x = x_ref[...]
    # Layer 1 on the MXU; the transpose is folded into the contraction:
    # (100, 3) . (tb, 3) contracting the size-3 axes -> (100, tb), so the
    # hidden block lands batch-on-lanes (lane-dense for tanh and the output).
    h = jax.lax.dot_general(
        w1_ref[...], x,
        dimension_numbers=(((1,), (1,)), ((), ())),
        preferred_element_type=jnp.float32,
    )
    h = h + b1_ref[...]                                   # (100, 1) bcast, VALU
    h = jnp.tanh(h.astype(tanh_dtype)).astype(jnp.float32)  # EUP
    # Layer 2 (N=1): VPU multiply + cross-sublane reduce (XLU slot is free).
    o = jnp.sum(h * w2_ref[...], axis=0, keepdims=True) + b2_ref[...]  # (1, tb)
    o_ref[...] = o.astype(o_ref.dtype)


def _choose_batch_tile(B, tb_req):
    """Lane-aligned batch tile; keep >= 2 grid steps when the batch allows it."""
    b_lane = ((B + _LANE - 1) // _LANE) * _LANE
    tb = max(_LANE, (min(tb_req, b_lane) // _LANE) * _LANE)
    # >= 2 grid steps lets dimension_semantics=("parallel",) shard across
    # v7x's two TensorCores; harmless elsewhere.
    if b_lane >= 2 * _LANE and tb > b_lane // 2:
        tb = max(_LANE, ((b_lane // 2) // _LANE) * _LANE)
    b_pad = ((b_lane + tb - 1) // tb) * tb
    return tb, b_pad


def sat_simple_net(x, w1, b1, w2, b2, *, tb=8192, tanh_dtype=jnp.float32):
    """Forward pass of SatSimpleNet.

    x : (B, 3) f32                      (same layout the PyTorch module takes)
    w1: (100, 3)  b1: (100,)            (PyTorch nn.Linear parameter shapes)
    w2: (1, 100)  b2: (1,)
    returns (B, 1) f32

    tanh_dtype=jnp.bfloat16 is an opt-in for v6e/v7x (EUP bf16 path ~2x);
    it relaxes accuracy to ~1e-2 relative, so the default stays f32.
    """
    B = x.shape[0]
    tb, b_pad = _choose_batch_tile(B, tb)
    grid = (b_pad // tb,)

    # Pad the batch only when needed (no host-side transpose of x).
    x_in = x if b_pad == B else jnp.zeros((b_pad, 3), x.dtype).at[:B].set(x)

    b1c = b1.reshape(100, 1)            # broadcast over lanes in-kernel
    w2c = w2.reshape(1, 100).T          # (100, 1)
    b2c = b2.reshape(1, 1)

    cost = pl.CostEstimate(
        flops=800 * b_pad,                              # ~2*100*3 + ~200 per elem
        transcendentals=100 * b_pad,                    # tanh per hidden unit
        bytes_accessed=16 * b_pad + 4 * (w1.size + b1.size + w2.size + b2.size),
    )

    out_t = pl.pallas_call(
        functools.partial(_mlp_kernel, tanh_dtype=tanh_dtype),
        out_shape=jax.ShapeDtypeStruct((1, b_pad), jnp.float32),
        grid=grid,
        in_specs=[
            pl.BlockSpec((tb, 3), lambda i: (i, 0)),    # x tile (pipelined)
            pl.BlockSpec((100, 3), lambda i: (0, 0)),   # weights VMEM-resident
            pl.BlockSpec((100, 1), lambda i: (0, 0)),
            pl.BlockSpec((100, 1), lambda i: (0, 0)),
            pl.BlockSpec((1, 1), lambda i: (0, 0)),
        ],
        out_specs=pl.BlockSpec((1, tb), lambda i: (0, i)),  # lane-dense output
        compiler_params=pltpu.CompilerParams(
            dimension_semantics=("parallel",)),
        cost_estimate=cost,
    )(x_in, w1, b1c, w2c, b2c)

    # Padded tail columns are garbage-in/garbage-out; slice them away.
    return out_t[:, :B].T               # (B, 1)


def init_params(key):
    """nn.Linear default init (U[-1/sqrt(fan_in), +1/sqrt(fan_in)]), PyTorch shapes."""
    k1, k2, k3, k4 = jax.random.split(key, 4)
    bound1 = 1.0 / jnp.sqrt(3.0)
    bound2 = 1.0 / jnp.sqrt(100.0)
    w1 = jax.random.uniform(k1, (100, 3), jnp.float32, -bound1, bound1)
    b1 = jax.random.uniform(k2, (100,), jnp.float32, -bound1, bound1)
    w2 = jax.random.uniform(k3, (1, 100), jnp.float32, -bound2, bound2)
    b2 = jax.random.uniform(k4, (1,), jnp.float32, -bound2, bound2)
    return w1, b1, w2, b2


if __name__ == "__main__":
    key = jax.random.PRNGKey(0)
    kx, kp = jax.random.split(key)
    w1, b1, w2, b2 = init_params(kp)

    # B=8 exercises the single-step path; B=300 exercises padding + a
    # multi-step (>=2) "parallel" grid (the v7x dual-TC path).
    for B in (8, 300):
        x = jax.random.normal(jax.random.fold_in(kx, B), (B, 3), jnp.float32)
        out = jax.block_until_ready(sat_simple_net(x, w1, b1, w2, b2))
        # Pure-JAX reference (PyTorch semantics: x @ W1.T + b1 -> tanh -> @ W2.T + b2).
        ref = jnp.tanh(x @ w1.T + b1) @ w2.T + b2
        assert out.shape == (B, 1)
        assert jnp.allclose(out, ref, atol=1e-5, rtol=1e-5)

    print("KERNEL_OK")
</pallas_src>

<mosaic_0001>
module attributes {stable_mosaic.version = 11 : i64} {
  func.func @_mlp_kernel(%arg0: i32, %arg1: memref<128x3xf32, #tpu.memory_space<vmem>>, %arg2: memref<100x3xf32, #tpu.memory_space<vmem>>, %arg3: memref<100x1xf32, #tpu.memory_space<vmem>>, %arg4: memref<100x1xf32, #tpu.memory_space<vmem>>, %arg5: memref<1x1xf32, #tpu.memory_space<vmem>>, %arg6: memref<1x128xf32, #tpu.memory_space<vmem>>) attributes {dimension_semantics = [#tpu.dimension_semantics<parallel>], iteration_bounds = array<i64: 1>, scalar_prefetch = 0 : i64, scratch_operands = 0 : i64, tpu.core_type = #tpu.core_type<tc>, window_params = [{transform_indices = @transform_0, window_bounds = array<i64: 128, 3>}, {pipeline_mode = #tpu.pipeline_mode<synchronous>, transform_indices = @transform_1, window_bounds = array<i64: 100, 3>}, {pipeline_mode = #tpu.pipeline_mode<synchronous>, transform_indices = @transform_2, window_bounds = array<i64: 100, 1>}, {pipeline_mode = #tpu.pipeline_mode<synchronous>, transform_indices = @transform_3, window_bounds = array<i64: 100, 1>}, {pipeline_mode = #tpu.pipeline_mode<synchronous>, transform_indices = @transform_4, window_bounds = array<i64: 1, 1>}, {transform_indices = @transform_5, window_bounds = array<i64: 1, 128>}]} {
    %c0 = arith.constant 0 : index
    %c0_0 = arith.constant 0 : index
    %0 = vector.load %arg1[%c0, %c0_0] : memref<128x3xf32, #tpu.memory_space<vmem>>, vector<128x3xf32>
    %c0_1 = arith.constant 0 : index
    %c0_2 = arith.constant 0 : index
    %1 = vector.load %arg2[%c0_1, %c0_2] : memref<100x3xf32, #tpu.memory_space<vmem>>, vector<100x3xf32>
    %cst = arith.constant dense<0.000000e+00> : vector<100x128xf32>
    %2 = tpu.matmul %1, %0, %cst {dimension_numbers = #tpu.dot_dimension_numbers<[1], [1], [0], [0], [0, 0, 1, 0], [], []>} : vector<100x3xf32>, vector<128x3xf32>, vector<100x128xf32> -> vector<100x128xf32>
    %c0_3 = arith.constant 0 : index
    %c0_4 = arith.constant 0 : index
    %3 = vector.load %arg3[%c0_3, %c0_4] : memref<100x1xf32, #tpu.memory_space<vmem>>, vector<100x1xf32>
    %4 = vector.broadcast %3 : vector<100x1xf32> to vector<100x128xf32>
    %5 = arith.addf %2, %4 : vector<100x128xf32>
    %6 = math.tanh %5 : vector<100x128xf32>
    %c0_5 = arith.constant 0 : index
    %c0_6 = arith.constant 0 : index
    %7 = vector.load %arg4[%c0_5, %c0_6] : memref<100x1xf32, #tpu.memory_space<vmem>>, vector<100x1xf32>
    %8 = vector.broadcast %7 : vector<100x1xf32> to vector<100x128xf32>
    %9 = arith.mulf %6, %8 : vector<100x128xf32>
    %cst_7 = arith.constant dense<0.000000e+00> : vector<128xf32>
    %10 = vector.multi_reduction <add>, %9, %cst_7 [0] : vector<100x128xf32> to vector<128xf32>
    %11 = vector.shape_cast %10 : vector<128xf32> to vector<1x128xf32>
    %c0_8 = arith.constant 0 : index
    %c0_9 = arith.constant 0 : index
    %12 = vector.load %arg5[%c0_8, %c0_9] : memref<1x1xf32, #tpu.memory_space<vmem>>, vector<1x1xf32>
    %13 = vector.broadcast %12 : vector<1x1xf32> to vector<1x128xf32>
    %14 = arith.addf %11, %13 : vector<1x128xf32>
    %c0_10 = arith.constant 0 : index
    %c0_11 = arith.constant 0 : index
    %15 = vector.load %arg6[%c0_10, %c0_11] : memref<1x128xf32, #tpu.memory_space<vmem>>, vector<1x128xf32>
    tpu.vector_store %arg6[%c0_10, %c0_11], %14 {strides = array<i32>} : memref<1x128xf32, #tpu.memory_space<vmem>>, vector<1x128xf32>,
    return
  }
  func.func @transform_0(%arg0: i32) -> (i32, i32) {
    %c0_i32 = arith.constant 0 : i32
    %c0_i32_0 = arith.constant 0 : i32
    return %arg0, %c0_i32 : i32, i32
  }
  func.func @transform_1(%arg0: i32) -> (i32, i32) {
    %c0_i32 = arith.constant 0 : i32
    %c0_i32_0 = arith.constant 0 : i32
    %c0_i32_1 = arith.constant 0 : i32
    return %c0_i32, %c0_i32_0 : i32, i32
  }
  func.func @transform_2(%arg0: i32) -> (i32, i32) {
    %c0_i32 = arith.constant 0 : i32
    %c0_i32_0 = arith.constant 0 : i32
    %c0_i32_1 = arith.constant 0 : i32
    return %c0_i32, %c0_i32_0 : i32, i32
  }
  func.func @transform_3(%arg0: i32) -> (i32, i32) {
    %c0_i32 = arith.constant 0 : i32
    %c0_i32_0 = arith.constant 0 : i32
    %c0_i32_1 = arith.constant 0 : i32
    return %c0_i32, %c0_i32_0 : i32, i32
  }
  func.func @transform_4(%arg0: i32) -> (i32, i32) {
    %c0_i32 = arith.constant 0 : i32
    %c0_i32_0 = arith.constant 0 : i32
    %c0_i32_1 = arith.constant 0 : i32
    return %c0_i32, %c0_i32_0 : i32, i32
  }
  func.func @transform_5(%arg0: i32) -> (i32, i32) {
    %c0_i32 = arith.constant 0 : i32
    %c0_i32_0 = arith.constant 0 : i32
    return %c0_i32, %arg0 : i32, i32
  }
}

</mosaic_0001>

<llo_original>
// kernel: tpu_custom_call.1
$region0: #{tpu_custom_call.1}
  #allocation0 [shape = 'u32[]', space=smem, size = 0x4, offset = 0x4, fixed_abs, tag = 'smem constant byte address 0x4 - core index']
  #allocation1 [shape = 'u32[144,128]{1,0:T(1,128)}', space=vmem, size = 0x12000, scoped, tag = 'internal scratch']
  #allocation2 [shape = 'f32[1,1]{1,0:T(1,128)S(1)}', space=vmem, size = 0x200, scoped, tag = 'scoped memory for tpu_custom_call.1']
  %s0 = inlined_call_operand.vmem [shape: f32[128,3], index: 0, kind: input, shape index: {}]
  %s1 = inlined_call_operand.vmem [shape: f32[100,3], index: 1, kind: input, shape index: {}]
  %s2 = inlined_call_operand.vmem [shape: f32[100,1], index: 2, kind: input, shape index: {}]
  %s3 = inlined_call_operand.vmem [shape: f32[100,1], index: 3, kind: input, shape index: {}]
  %s4 = inlined_call_operand.<no memory space> [shape: f32[1,1], index: 4, kind: input, shape index: {}]
  %s5 = inlined_call_operand.hbm [shape: f32[1,128], index: 5, kind: output, shape index: {}]
  %s6 = sld [smem:[#allocation0]]
  $region30: #{tpu_custom_call.1} parent=0
    _
  %s8 = ssub.s32 1, %s6
  %s9 = scalar_select 0, %s8, %s6
  %v10 = vstv %s4
  %11 = vst [vmem:[#allocation2] sm:$0x1] %v10
  $region1: #{tpu_custom_call.1} parent=0
    #allocation3 [shape = 'u8[512]{0}', space=vmem, size = 0x400, scoped, tag = 'output window, operand 0, single buffered']
    #allocation4 [shape = 's32[1]{0}', space=sflag, size = 0x4, scoped, tag = 'scoped memory for tpu_custom_call.1']
    %12 = vsyncpa [#allocation4], 0
    // Predicated region
    $region2: #{tpu_custom_call.1} parent=1 // pred_check
      _
    $region3: #{tpu_custom_call.1} parent=1 // pred_check_branch
      %14 = sbr.rel (0) target = $region5
    $region4: #{tpu_custom_call.1} parent=1 // pred_region
      _
    $region5: #{tpu_custom_call.1} parent=1 // pred_fallthru
      _
    // Predicated region
    $region6: #{tpu_custom_call.1} parent=1 // pred_check
      _
    $region7: #{tpu_custom_call.1} parent=1 // pred_check_branch
      %16 = sbr.rel (0) target = $region9
    $region8: #{tpu_custom_call.1} parent=1 // pred_region
      _
    $region9: #{tpu_custom_call.1} parent=1 // pred_fallthru
      _
    // Predicated region
    $region10: #{tpu_custom_call.1} parent=1 // pred_check
      _
    $region11: #{tpu_custom_call.1} parent=1 // pred_check_branch
      %18 = sbr.rel (0) target = $region13
    $region12: #{tpu_custom_call.1} parent=1 // pred_region
      _
    $region13: #{tpu_custom_call.1} parent=1 // pred_fallthru
      _
    // Predicated region
    $region14: #{tpu_custom_call.1} parent=1 // pred_check
      _
    $region15: #{tpu_custom_call.1} parent=1 // pred_check_branch
      %20 = sbr.rel (0) target = $region17
    $region16: #{tpu_custom_call.1} parent=1 // pred_region
      _
    $region17: #{tpu_custom_call.1} parent=1 // pred_fallthru
      _
    // Predicated region
    $region18: #{tpu_custom_call.1} parent=1 // pred_check
      _
    $region19: #{tpu_custom_call.1} parent=1 // pred_check_branch
      %22 = sbr.rel (0) target = $region21
    $region20: #{tpu_custom_call.1} parent=1 // pred_region
      _
    $region21: #{tpu_custom_call.1} parent=1 // pred_fallthru
      _
    %v23 = vld [vmem:[%s0] sm:$0xff]
    %v24 = vld [vmem:[%s0 + $0x8] sm:$0xff]
    %v25 = vld [vmem:[%s0 + $0x10] sm:$0xff]
    %v26 = vld [vmem:[%s0 + $0x18] sm:$0xff]
    %v27 = vld [vmem:[%s0 + $0x20] sm:$0xff]
    %v28 = vld [vmem:[%s0 + $0x28] sm:$0xff]
    %v29 = vld [vmem:[%s0 + $0x30] sm:$0xff]
    %v30 = vld [vmem:[%s0 + $0x38] sm:$0xff]
    %v31 = vld [vmem:[%s0 + $0x40] sm:$0xff]
    %v32 = vld [vmem:[%s0 + $0x48] sm:$0xff]
    %v33 = vld [vmem:[%s0 + $0x50] sm:$0xff]
    %v34 = vld [vmem:[%s0 + $0x58] sm:$0xff]
    %v35 = vld [vmem:[%s0 + $0x60] sm:$0xff]
    %v36 = vld [vmem:[%s0 + $0x68] sm:$0xff]
    %v37 = vld [vmem:[%s0 + $0x70] sm:$0xff]
    %v38 = vld [vmem:[%s0 + $0x78] sm:$0xff]
    %v39 = vld [vmem:[%s1] sm:$0xff]
    %v40 = vld [vmem:[%s1 + $0x8] sm:$0xff]
    %v41 = vld [vmem:[%s1 + $0x10] sm:$0xff]
    %v42 = vld [vmem:[%s1 + $0x18] sm:$0xff]
    %v43 = vld [vmem:[%s1 + $0x20] sm:$0xff]
    %v44 = vld [vmem:[%s1 + $0x28] sm:$0xff]
    %v45 = vld [vmem:[%s1 + $0x30] sm:$0xff]
    %v46 = vld [vmem:[%s1 + $0x38] sm:$0xff]
    %v47 = vld [vmem:[%s1 + $0x40] sm:$0xff]
    %v48 = vld [vmem:[%s1 + $0x48] sm:$0xff]
    %v49 = vld [vmem:[%s1 + $0x50] sm:$0xff]
    %v50 = vld [vmem:[%s1 + $0x58] sm:$0xff]
    %v51 = vld [vmem:[%s1 + $0x60] sm:$0xf]
    %v52 = vld [vmem:[%s2] sm:$0xff]
    %v53 = vld [vmem:[%s2 + $0x8] sm:$0xff]
    %v54 = vld [vmem:[%s2 + $0x10] sm:$0xff]
    %v55 = vld [vmem:[%s2 + $0x18] sm:$0xff]
    %v56 = vld [vmem:[%s2 + $0x20] sm:$0xff]
    %v57 = vld [vmem:[%s2 + $0x28] sm:$0xff]
    %v58 = vld [vmem:[%s2 + $0x30] sm:$0xff]
    %v59 = vld [vmem:[%s2 + $0x38] sm:$0xff]
    %v60 = vld [vmem:[%s2 + $0x40] sm:$0xff]
    %v61 = vld [vmem:[%s2 + $0x48] sm:$0xff]
    %v62 = vld [vmem:[%s2 + $0x50] sm:$0xff]
    %v63 = vld [vmem:[%s2 + $0x58] sm:$0xff]
    %v64 = vld [vmem:[%s2 + $0x60] sm:$0xf]
    %66 = vset.pattern.permute.xlu0 0
    %67 = vperm.xlu0 %66, %v52
    %v68 = vpop.permute.xlu0 %67
    %71 = vset.pattern.permute.xlu0 0
    %72 = vperm.xlu0 %71, %v53
    %v73 = vpop.permute.xlu0 %72
    %76 = vset.pattern.permute.xlu0 0
    %77 = vperm.xlu0 %76, %v54
    %v78 = vpop.permute.xlu0 %77
    %81 = vset.pattern.permute.xlu0 0
    %82 = vperm.xlu0 %81, %v55
    %v83 = vpop.permute.xlu0 %82
    %86 = vset.pattern.permute.xlu0 0
    %87 = vperm.xlu0 %86, %v56
    %v88 = vpop.permute.xlu0 %87
    %91 = vset.pattern.permute.xlu0 0
    %92 = vperm.xlu0 %91, %v57
    %v93 = vpop.permute.xlu0 %92
    %96 = vset.pattern.permute.xlu0 0
    %97 = vperm.xlu0 %96, %v58
    %v98 = vpop.permute.xlu0 %97
    %101 = vset.pattern.permute.xlu0 0
    %102 = vperm.xlu0 %101, %v59
    %v103 = vpop.permute.xlu0 %102
    %106 = vset.pattern.permute.xlu0 0
    %107 = vperm.xlu0 %106, %v60
    %v108 = vpop.permute.xlu0 %107
    %111 = vset.pattern.permute.xlu0 0
    %112 = vperm.xlu0 %111, %v61
    %v113 = vpop.permute.xlu0 %112
    %116 = vset.pattern.permute.xlu0 0
    %117 = vperm.xlu0 %116, %v62
    %v118 = vpop.permute.xlu0 %117
    %121 = vset.pattern.permute.xlu0 0
    %122 = vperm.xlu0 %121, %v63
    %v123 = vpop.permute.xlu0 %122
    %126 = vset.pattern.permute.xlu0 0
    %127 = vperm.xlu0 %126, %v64
    %v128 = vpop.permute.xlu0 %127
    %vm130 = vcmask 23552
    %v132 = vsel %vm130, %v39, 0
    %v135 = vsel %vm130, %v40, 0
    %v138 = vsel %vm130, %v41, 0
    %v141 = vsel %vm130, %v42, 0
    %v144 = vsel %vm130, %v43, 0
    %v147 = vsel %vm130, %v44, 0
    %v150 = vsel %vm130, %v45, 0
    %v153 = vsel %vm130, %v46, 0
    %v156 = vsel %vm130, %v47, 0
    %v159 = vsel %vm130, %v48, 0
    %v162 = vsel %vm130, %v49, 0
    %v165 = vsel %vm130, %v50, 0
    %v168 = vsel %vm130, %v51, 0
    %v171 = vsel %vm130, %v23, 0
    %v174 = vsel %vm130, %v24, 0
    %v177 = vsel %vm130, %v25, 0
    %v180 = vsel %vm130, %v26, 0
    %v183 = vsel %vm130, %v27, 0
    %v186 = vsel %vm130, %v28, 0
    %v189 = vsel %vm130, %v29, 0
    %v192 = vsel %vm130, %v30, 0
    %v195 = vsel %vm130, %v31, 0
    %v198 = vsel %vm130, %v32, 0
    %v201 = vsel %vm130, %v33, 0
    %v204 = vsel %vm130, %v34, 0
    %v207 = vsel %vm130, %v35, 0
    %v210 = vsel %vm130, %v36, 0
    %v213 = vsel %vm130, %v37, 0
    %v216 = vsel %vm130, %v38, 0
    %218 = vmatprep.subr.mxu0 0.0
    %219 = vmatpush1.xpose.msra.mxu0 %v216
    %220 = vmatprep.subr.mxu0 0.0
    %221 = vmatpush1.xpose.msra.mxu0 %v213
    %222 = vmatprep.subr.mxu0 0.0
    %223 = vmatpush1.xpose.msra.mxu0 %v210
    %224 = vmatprep.subr.mxu0 0.0
    %225 = vmatpush1.xpose.msra.mxu0 %v207
    %226 = vmatprep.subr.mxu0 0.0
    %227 = vmatpush1.xpose.msra.mxu0 %v204
    %228 = vmatprep.subr.mxu0 0.0
    %229 = vmatpush1.xpose.msra.mxu0 %v201
    %230 = vmatprep.subr.mxu0 0.0
    %231 = vmatpush1.xpose.msra.mxu0 %v198
    %232 = vmatprep.subr.mxu0 0.0
    %233 = vmatpush1.xpose.msra.mxu0 %v195
    %234 = vmatprep.subr.mxu0 0.0
    %235 = vmatpush1.xpose.msra.mxu0 %v192
    %236 = vmatprep.subr.mxu0 0.0
    %237 = vmatpush1.xpose.msra.mxu0 %v189
    %238 = vmatprep.subr.mxu0 0.0
    %239 = vmatpush1.xpose.msra.mxu0 %v186
    %240 = vmatprep.subr.mxu0 0.0
    %241 = vmatpush1.xpose.msra.mxu0 %v183
    %242 = vmatprep.subr.mxu0 0.0
    %243 = vmatpush1.xpose.msra.mxu0 %v180
    %244 = vmatprep.subr.mxu0 0.0
    %245 = vmatpush1.xpose.msra.mxu0 %v177
    %246 = vmatprep.subr.mxu0 0.0
    %247 = vmatpush1.xpose.msra.mxu0 %v174
    %248 = vmatprep.subr.mxu0 0.0
    %249 = vmatpush1.xpose.msra.mxu0 %v171
    %250 = vmatprep.subr.mxu0 0.0
    %251 = vmatpush2.xpose.msra.mxu0 0.0
    %252 = vmatprep.subr.mxu0 0.0
    %253 = vmatpush2.xpose.msra.mxu0 0.0
    %254 = vmatprep.subr.mxu0 0.0
    %255 = vmatpush2.xpose.msra.mxu0 0.0
    %256 = vmatprep.subr.mxu0 0.0
    %257 = vmatpush2.xpose.msra.mxu0 0.0
    %258 = vmatprep.subr.mxu0 0.0
    %259 = vmatpush2.xpose.msra.mxu0 0.0
    %260 = vmatprep.subr.mxu0 0.0
    %261 = vmatpush2.xpose.msra.mxu0 0.0
    %262 = vmatprep.subr.mxu0 0.0
    %263 = vmatpush2.xpose.msra.mxu0 0.0
    %264 = vmatprep.subr.mxu0 0.0
    %265 = vmatpush2.xpose.msra.mxu0 0.0
    %266 = vmatprep.subr.mxu0 0.0
    %267 = vmatpush2.xpose.msra.mxu0 0.0
    %268 = vmatprep.subr.mxu0 0.0
    %269 = vmatpush2.xpose.msra.mxu0 0.0
    %270 = vmatprep.subr.mxu0 0.0
    %271 = vmatpush2.xpose.msra.mxu0 0.0
    %272 = vmatprep.subr.mxu0 0.0
    %273 = vmatpush2.xpose.msra.mxu0 0.0
    %274 = vmatprep.subr.mxu0 0.0
    %275 = vmatpush2.xpose.msra.mxu0 0.0
    %276 = vmatprep.subr.mxu0 0.0
    %277 = vmatpush2.xpose.msra.mxu0 0.0
    %278 = vmatprep.subr.mxu0 0.0
    %279 = vmatpush2.xpose.msra.mxu0 0.0
    %280 = vmatprep.subr.mxu0 0.0
    %281 = vmatpush2.xpose.msra.mxu0 0.0
    %282 = vmatprep.mubr.f32.mxu0 0.0
    %283 = vmatmul.mubr.f32.gmra.mxu0 %v132
    %v284 = vpop.f32.mrf.mxu0
    %v285 = vadd.f32 %v68, %v284
    %v286 = vpop.f32.mrf.mxu0
    %287 = vmatprep.mubr.f32.mxu0 0.0
    %288 = vmatmul.mubr.f32.gmra.mxu0 %v135
    %v289 = vpop.f32.mrf.mxu0
    %v290 = vadd.f32 %v73, %v289
    %v291 = vpop.f32.mrf.mxu0
    %292 = vmatprep.mubr.f32.mxu0 0.0
    %293 = vmatmul.mubr.f32.gmra.mxu0 %v138
    %v294 = vpop.f32.mrf.mxu0
    %v295 = vadd.f32 %v78, %v294
    %v296 = vpop.f32.mrf.mxu0
    %297 = vmatprep.mubr.f32.mxu0 0.0
    %298 = vmatmul.mubr.f32.gmra.mxu0 %v141
    %v299 = vpop.f32.mrf.mxu0
    %v300 = vadd.f32 %v83, %v299
    %v301 = vpop.f32.mrf.mxu0
    %302 = vmatprep.mubr.f32.mxu0 0.0
    %303 = vmatmul.mubr.f32.gmra.mxu0 %v144
    %v304 = vpop.f32.mrf.mxu0
    %v305 = vadd.f32 %v88, %v304
    %v306 = vpop.f32.mrf.mxu0
    %307 = vmatprep.mubr.f32.mxu0 0.0
    %308 = vmatmul.mubr.f32.gmra.mxu0 %v147
    %v309 = vpop.f32.mrf.mxu0
    %v310 = vadd.f32 %v93, %v309
    %v311 = vpop.f32.mrf.mxu0
    %312 = vmatprep.mubr.f32.mxu0 0.0
    %313 = vmatmul.mubr.f32.gmra.mxu0 %v150
    %v314 = vpop.f32.mrf.mxu0
    %v315 = vadd.f32 %v98, %v314
    %v316 = vpop.f32.mrf.mxu0
    %317 = vmatprep.mubr.f32.mxu0 0.0
    %318 = vmatmul.mubr.f32.gmra.mxu0 %v153
    %v319 = vpop.f32.mrf.mxu0
    %v320 = vadd.f32 %v103, %v319
    %v321 = vpop.f32.mrf.mxu0
    %322 = vmatprep.mubr.f32.mxu0 0.0
    %323 = vmatmul.mubr.f32.gmra.mxu0 %v156
    %v324 = vpop.f32.mrf.mxu0
    %v325 = vadd.f32 %v108, %v324
    %v326 = vpop.f32.mrf.mxu0
    %327 = vmatprep.mubr.f32.mxu0 0.0
    %328 = vmatmul.mubr.f32.gmra.mxu0 %v159
    %v329 = vpop.f32.mrf.mxu0
    %v330 = vadd.f32 %v113, %v329
    %v331 = vpop.f32.mrf.mxu0
    %332 = vmatprep.mubr.f32.mxu0 0.0
    %333 = vmatmul.mubr.f32.gmra.mxu0 %v162
    %v334 = vpop.f32.mrf.mxu0
    %v335 = vadd.f32 %v118, %v334
    %v336 = vpop.f32.mrf.mxu0
    %337 = vmatprep.mubr.f32.mxu0 0.0
    %338 = vmatmul.mubr.f32.gmra.mxu0 %v165
    %v339 = vpop.f32.mrf.mxu0
    %v340 = vadd.f32 %v123, %v339
    %v341 = vpop.f32.mrf.mxu0
    %342 = vmatprep.mubr.f32.mxu0 0.0
    %343 = vmatmul.mubr.f32.gmra.mxu0 %v168
    %v344 = vpop.f32.mrf.mxu0
    %v345 = vadd.f32 %v128, %v344
    %v346 = vpop.f32.mrf.mxu0
    %347 = vdwg.mxu0
    %v348 = vtanh.pop %v285
    %v349 = vtanh.pop %v290
    %v350 = vtanh.pop %v295
    %v351 = vtanh.pop %v300
    %v352 = vtanh.pop %v305
    %v353 = vtanh.pop %v310
    %v354 = vtanh.pop %v315
    %v355 = vtanh.pop %v320
    %v356 = vtanh.pop %v325
    %v357 = vtanh.pop %v330
    %v358 = vtanh.pop %v335
    %v359 = vtanh.pop %v340
    %v360 = vtanh.pop %v345
    %v361 = vld [vmem:[%s3] sm:$0xff]
    %v362 = vld [vmem:[%s3 + $0x8] sm:$0xff]
    %v363 = vld [vmem:[%s3 + $0x10] sm:$0xff]
    %v364 = vld [vmem:[%s3 + $0x18] sm:$0xff]
    %v365 = vld [vmem:[%s3 + $0x20] sm:$0xff]
    %v366 = vld [vmem:[%s3 + $0x28] sm:$0xff]
    %v367 = vld [vmem:[%s3 + $0x30] sm:$0xff]
    %v368 = vld [vmem:[%s3 + $0x38] sm:$0xff]
    %v369 = vld [vmem:[%s3 + $0x40] sm:$0xff]
    %v370 = vld [vmem:[%s3 + $0x48] sm:$0xff]
    %v371 = vld [vmem:[%s3 + $0x50] sm:$0xff]
    %v372 = vld [vmem:[%s3 + $0x58] sm:$0xff]
    %v373 = vld [vmem:[%s3 + $0x60] sm:$0xf]
    %375 = vset.pattern.permute.xlu0 0
    %376 = vperm.xlu0 %375, %v361
    %v377 = vpop.permute.xlu0 %376
    %380 = vset.pattern.permute.xlu0 0
    %381 = vperm.xlu0 %380, %v362
    %v382 = vpop.permute.xlu0 %381
    %385 = vset.pattern.permute.xlu0 0
    %386 = vperm.xlu0 %385, %v363
    %v387 = vpop.permute.xlu0 %386
    %390 = vset.pattern.permute.xlu0 0
    %391 = vperm.xlu0 %390, %v364
    %v392 = vpop.permute.xlu0 %391
    %395 = vset.pattern.permute.xlu0 0
    %396 = vperm.xlu0 %395, %v365
    %v397 = vpop.permute.xlu0 %396
    %400 = vset.pattern.permute.xlu0 0
    %401 = vperm.xlu0 %400, %v366
    %v402 = vpop.permute.xlu0 %401
    %405 = vset.pattern.permute.xlu0 0
    %406 = vperm.xlu0 %405, %v367
    %v407 = vpop.permute.xlu0 %406
    %410 = vset.pattern.permute.xlu0 0
    %411 = vperm.xlu0 %410, %v368
    %v412 = vpop.permute.xlu0 %411
    %415 = vset.pattern.permute.xlu0 0
    %416 = vperm.xlu0 %415, %v369
    %v417 = vpop.permute.xlu0 %416
    %420 = vset.pattern.permute.xlu0 0
    %421 = vperm.xlu0 %420, %v370
    %v422 = vpop.permute.xlu0 %421
    %425 = vset.pattern.permute.xlu0 0
    %426 = vperm.xlu0 %425, %v371
    %v427 = vpop.permute.xlu0 %426
    %430 = vset.pattern.permute.xlu0 0
    %431 = vperm.xlu0 %430, %v372
    %v432 = vpop.permute.xlu0 %431
    %435 = vset.pattern.permute.xlu0 0
    %436 = vperm.xlu0 %435, %v373
    %v437 = vpop.permute.xlu0 %436
    %v439 = vmul.f32 %v348, %v377
    %v440 = vmul.f32 %v349, %v382
    %v441 = vmul.f32 %v350, %v387
    %v442 = vmul.f32 %v351, %v392
    %v443 = vmul.f32 %v352, %v397
    %v444 = vmul.f32 %v353, %v402
    %v445 = vmul.f32 %v354, %v407
    %v446 = vmul.f32 %v355, %v412
    %v447 = vmul.f32 %v356, %v417
    %v448 = vmul.f32 %v357, %v422
    %v449 = vmul.f32 %v358, %v427
    %v450 = vmul.f32 %v359, %v432
    %v451 = vmul.f32 %v360, %v437
    %v452 = vadd.f32 %v439, %v440
    %v453 = vadd.f32 %v452, %v441
    %v454 = vadd.f32 %v453, %v442
    %v455 = vadd.f32 %v454, %v443
    %v456 = vadd.f32 %v455, %v444
    %v457 = vadd.f32 %v456, %v445
    %v458 = vadd.f32 %v457, %v446
    %v459 = vadd.f32 %v458, %v447
    %v460 = vadd.f32 %v459, %v448
    %v461 = vadd.f32 %v460, %v449
    %v462 = vadd.f32 %v461, %v450
    %vm463 = vcmask 1043456
    %v464 = vsel %vm463, %v451, 0.0
    %v465 = vadd.f32 %v462, %v464
    %v466 = vrot.slane %v465, 4
    %v467 = vadd.f32 %v465, %v466
    %v468 = vrot.slane %v467, 2
    %v469 = vadd.f32 %v467, %v468
    %v470 = vrot.slane %v469, 1
    %v471 = vadd.f32 %v469, %v470
    %v472 = vld [vmem:[#allocation2] sm:$0x1]
    %474 = vset.pattern.permute.xlu0 0
    %475 = vperm.xlu0 %474, %v472
    %v476 = vpop.permute.xlu0 %475
    %v478 = vlaneseq
    %v479 = vshrl.u32 %v478, 7
    %v480 = vsub.s32 0, %v479
    %v481 = vrot.slane %v476, %v480
    %v482 = vadd.f32 %v471, %v481
    %483 = vst [vmem:[#allocation3] sm:$0x1] %v482
    // Predicated region
    $region22: #{tpu_custom_call.1} parent=1 // pred_check
      _
    $region23: #{tpu_custom_call.1} parent=1 // pred_check_branch
      %485 = sbr.rel (0) target = $region25
    $region24: #{tpu_custom_call.1} parent=1 // pred_region
      %s487 = ssub.s32 16, 16
      %488 = vsyncadd [#allocation4], %s487
      %s490 = sshll.u32 [#allocation3], 4
      %s491 = int_to_ptr.vmem [resolvable:$true] %s490
      %493 = dma.vmem_to_hbm [thread:$0]  %s491, 16, %s5, [#allocation4]
    $region25: #{tpu_custom_call.1} parent=1 // pred_fallthru
      _
    // Predicated region
    $region26: #{tpu_custom_call.1} parent=1 // pred_check
      _
    $region27: #{tpu_custom_call.1} parent=1 // pred_check_branch
      %495 = sbr.rel (0) target = $region29
    $region28: #{tpu_custom_call.1} parent=1 // pred_region
      %496 = dma.done [#allocation4], 16
    $region29: #{tpu_custom_call.1} parent=1 // pred_fallthru
      _
    %497 = vsyncpa [#allocation4], 1

</llo_original>
